<compile_context>
chip_gen: v7x
topology: tpu7x:2x2x1
jax: 0.10.0
libtpu: 0.0.40
codegen_flags: <defaults>
</compile_context>

<pallas_src>
import functools

import jax
import jax.numpy as jnp
from jax import lax
from jax.experimental import pallas as pl
from jax.experimental.pallas import tpu as pltpu


def _round_up(x, m):
    return (x + m - 1) // m * m


def _conv1d_kernel(xm_ref, xh_ref, w_ref, b_ref, o_ref, *,
                   kernel_size, dilation, t_tile):
    """One (batch, time-tile) grid step.

    xm_ref : (1, C_in, T_tile)   bf16 -- main input tile
    xh_ref : (1, C_in, H)        bf16 -- halo = start of the next tile
    w_ref  : (C_out, K*C_in)     bf16 -- taps folded into the contraction dim
    b_ref  : (C_out, 1)          f32
    o_ref  : (1, C_out, T_tile)
    """
    # (C_in, T_tile + H) window with halo appended (once per tile).
    xwin = jnp.concatenate([xm_ref[0], xh_ref[0]], axis=1)
    # Stack the K shifted slices along the contraction dim -> (K*C_in, T_tile).
    taps = [xwin[:, k * dilation:k * dilation + t_tile]
            for k in range(kernel_size)]
    xcat = jnp.concatenate(taps, axis=0)
    # Single MXU matmul, f32 accumulation.
    acc = jnp.dot(w_ref[...], xcat, preferred_element_type=jnp.float32)
    acc = acc + b_ref[...]                       # (C_out, 1) broadcast
    o_ref[0] = acc.astype(o_ref.dtype)


def conv_norm_forward(x, weight, bias, *, stride=1, padding=None, dilation=1,
                      base_t_tile=512, compute_dtype=jnp.bfloat16):
    """ConvNorm.forward: Conv1d(x) with the given weight/bias.

    x      : (B, C_in, T)
    weight : (C_out, C_in, K)
    bias   : (C_out,)
    """
    B, C_in, T = x.shape
    C_out, C_in_w, K = weight.shape
    assert C_in == C_in_w
    if padding is None:
        assert K % 2 == 1
        padding = int(dilation * (K - 1) / 2)

    halo = dilation * (K - 1)
    t_out_dense = T + 2 * padding - halo          # stride=1 output length
    assert t_out_dense >= 1

    # Lane-dense tiling of the dense output time axis.
    H = _round_up(max(halo, 1), 128)              # halo fetch width (>=128)
    t_tile = min(base_t_tile, _round_up(t_out_dense, 128))
    t_tile = _round_up(max(t_tile, H), H)         # keep T_tile % H == 0
    n_t = pl.cdiv(t_out_dense, t_tile)
    t_out_pad = n_t * t_tile
    t_in_pad = t_out_pad + H
    t_ratio = t_tile // H

    # Pad (conv padding + alignment padding) and cast once in HBM.
    x_pad = jnp.pad(x, ((0, 0), (0, 0), (padding, t_in_pad - T - padding)))
    x_pad = x_pad.astype(compute_dtype)

    # Fold K into the contraction: (C_out, C_in, K) -> (C_out, K*C_in),
    # K-major so each tap is a contiguous lane-dense chunk.
    w2 = jnp.transpose(weight, (0, 2, 1)).reshape(C_out, K * C_in)
    w2 = w2.astype(compute_dtype)
    bias2d = bias.reshape(C_out, 1).astype(jnp.float32)

    kernel = functools.partial(_conv1d_kernel, kernel_size=K,
                               dilation=dilation, t_tile=t_tile)

    # NOTE: for very large C_out one would add a third "parallel" grid axis
    # tiling C_out; at typical ConvNorm channel counts a single block is fine.
    out = pl.pallas_call(
        kernel,
        out_shape=jax.ShapeDtypeStruct((B, C_out, t_out_pad), x.dtype),
        grid_spec=pltpu.PrefetchScalarGridSpec(
            num_scalar_prefetch=0,
            grid=(B, n_t),
            in_specs=[
                # Main time tile of this block.
                pl.BlockSpec((1, C_in, t_tile), lambda b, t: (b, 0, t)),
                # Halo: first H columns of the next tile (same array).
                pl.BlockSpec((1, C_in, H),
                             lambda b, t: (b, 0, (t + 1) * t_ratio)),
                # Folded weight + bias (constant across the grid).
                pl.BlockSpec((C_out, K * C_in), lambda b, t: (0, 0)),
                pl.BlockSpec((C_out, 1), lambda b, t: (0, 0)),
            ],
            out_specs=pl.BlockSpec((1, C_out, t_tile), lambda b, t: (b, 0, t)),
        ),
        compiler_params=pltpu.CompilerParams(
            dimension_semantics=("parallel", "parallel"),
            vmem_limit_bytes=48 * 1024 * 1024,
        ),
    )(x_pad, x_pad, w2, bias2d)

    out = out[:, :, :t_out_dense]
    if stride > 1:
        # Dense conv + subsample == strided conv; avoids strided VMEM reads.
        out = out[:, :, ::stride]
    return out


def init_conv_norm_params(key, in_channels, out_channels, kernel_size,
                          w_init_gain="linear"):
    """Synthetic init matching ConvNorm.__init__ shapes (xavier_uniform)."""
    kw, kb = jax.random.split(key)
    gain = 1.0  # calculate_gain('linear')
    fan_in = in_channels * kernel_size
    fan_out = out_channels * kernel_size
    bound_w = gain * (6.0 / (fan_in + fan_out)) ** 0.5
    weight = jax.random.uniform(
        kw, (out_channels, in_channels, kernel_size),
        minval=-bound_w, maxval=bound_w, dtype=jnp.float32)
    bound_b = 1.0 / (fan_in ** 0.5)
    bias = jax.random.uniform(
        kb, (out_channels,), minval=-bound_b, maxval=bound_b,
        dtype=jnp.float32)
    return weight, bias


if __name__ == "__main__":
    # Small shapes consistent with ConvNorm on a (B, C_in, T) signal.
    B, C_IN, C_OUT, T, K = 2, 4, 6, 16, 3

    key = jax.random.PRNGKey(0)
    kx, kp = jax.random.split(key)
    x = jax.random.normal(kx, (B, C_IN, T), dtype=jnp.float32)
    weight, bias = init_conv_norm_params(kp, C_IN, C_OUT, K)

    # --- default: kernel_size=3, stride=1, padding=1 ---
    out = conv_norm_forward(x, weight, bias)
    out = jax.block_until_ready(out)

    # Reference on the same bf16-rounded operands (kernel is bf16 x bf16 -> f32).
    xr = x.astype(jnp.bfloat16).astype(jnp.float32)
    wr = weight.astype(jnp.bfloat16).astype(jnp.float32)
    ref = lax.conv_general_dilated(
        xr, wr, window_strides=(1,), padding=((1, 1),),
        dimension_numbers=("NCH", "OIH", "NCH"),
    ) + bias.reshape(1, C_OUT, 1)
    assert out.shape == (B, C_OUT, T), out.shape
    assert jnp.allclose(out, ref, atol=1e-4, rtol=1e-4), \
        float(jnp.max(jnp.abs(out - ref)))

    # --- strided + dilated variant (dense conv in kernel, subsample in wrapper) ---
    out2 = conv_norm_forward(x, weight, bias, stride=2, dilation=2)
    out2 = jax.block_until_ready(out2)
    pad2 = 2 * (K - 1) // 2
    ref2 = lax.conv_general_dilated(
        xr, wr, window_strides=(2,), padding=((pad2, pad2),),
        rhs_dilation=(2,),
        dimension_numbers=("NCH", "OIH", "NCH"),
    ) + bias.reshape(1, C_OUT, 1)
    assert out2.shape == ref2.shape, (out2.shape, ref2.shape)
    assert jnp.allclose(out2, ref2, atol=1e-4, rtol=1e-4), \
        float(jnp.max(jnp.abs(out2 - ref2)))

    print("KERNEL_OK")
</pallas_src>

<mosaic_0001>
module attributes {stable_mosaic.version = 11 : i64} {
  func.func @_conv1d_kernel(%arg0: i32, %arg1: i32, %arg2: memref<1x4x128xbf16, #tpu.memory_space<vmem>>, %arg3: memref<1x4x128xbf16, #tpu.memory_space<vmem>>, %arg4: memref<6x12xbf16, #tpu.memory_space<vmem>>, %arg5: memref<6x1xf32, #tpu.memory_space<vmem>>, %arg6: memref<1x6x128xf32, #tpu.memory_space<vmem>>) attributes {dimension_semantics = [#tpu.dimension_semantics<parallel>, #tpu.dimension_semantics<parallel>], iteration_bounds = array<i64: 2, 1>, scalar_prefetch = 0 : i64, scratch_operands = 0 : i64, tpu.core_type = #tpu.core_type<tc>, window_params = [{transform_indices = @transform_0, window_bounds = array<i64: 1, 4, 128>}, {transform_indices = @transform_1, window_bounds = array<i64: 1, 4, 128>}, {pipeline_mode = #tpu.pipeline_mode<synchronous>, transform_indices = @transform_2, window_bounds = array<i64: 6, 12>}, {pipeline_mode = #tpu.pipeline_mode<synchronous>, transform_indices = @transform_3, window_bounds = array<i64: 6, 1>}, {transform_indices = @transform_4, window_bounds = array<i64: 1, 6, 128>}]} {
    %c0 = arith.constant 0 : index
    %c0_0 = arith.constant 0 : index
    %c0_1 = arith.constant 0 : index
    %0 = vector.load %arg2[%c0, %c0_0, %c0_1] : memref<1x4x128xbf16, #tpu.memory_space<vmem>>, vector<1x4x128xbf16>
    %1 = vector.shape_cast %0 : vector<1x4x128xbf16> to vector<4x128xbf16>
    %c0_2 = arith.constant 0 : index
    %c0_3 = arith.constant 0 : index
    %c0_4 = arith.constant 0 : index
    %2 = vector.load %arg3[%c0_2, %c0_3, %c0_4] : memref<1x4x128xbf16, #tpu.memory_space<vmem>>, vector<1x4x128xbf16>
    %3 = vector.shape_cast %2 : vector<1x4x128xbf16> to vector<4x128xbf16>
    %4 = tpu.concatenate %1, %3 in 1 : vector<4x128xbf16>, vector<4x128xbf16> -> vector<4x256xbf16>
    %5 = vector.extract_strided_slice %4 {offsets = [0, 0], sizes = [4, 128], strides = [1, 1]} : vector<4x256xbf16> to vector<4x128xbf16>
    %6 = vector.extract_strided_slice %4 {offsets = [0, 1], sizes = [4, 128], strides = [1, 1]} : vector<4x256xbf16> to vector<4x128xbf16>
    %7 = vector.extract_strided_slice %4 {offsets = [0, 2], sizes = [4, 128], strides = [1, 1]} : vector<4x256xbf16> to vector<4x128xbf16>
    %8 = tpu.concatenate %5, %6, %7 in 0 : vector<4x128xbf16>, vector<4x128xbf16>, vector<4x128xbf16> -> vector<12x128xbf16>
    %c0_5 = arith.constant 0 : index
    %c0_6 = arith.constant 0 : index
    %9 = vector.load %arg4[%c0_5, %c0_6] : memref<6x12xbf16, #tpu.memory_space<vmem>>, vector<6x12xbf16>
    %cst = arith.constant dense<0.000000e+00> : vector<6x128xf32>
    %10 = tpu.matmul %9, %8, %cst {dimension_numbers = #tpu.dot_dimension_numbers<[1], [0], [0], [1], [0, 0, 1, 1], [], []>} : vector<6x12xbf16>, vector<12x128xbf16>, vector<6x128xf32> -> vector<6x128xf32>
    %c0_7 = arith.constant 0 : index
    %c0_8 = arith.constant 0 : index
    %11 = vector.load %arg5[%c0_7, %c0_8] : memref<6x1xf32, #tpu.memory_space<vmem>>, vector<6x1xf32>
    %12 = vector.broadcast %11 : vector<6x1xf32> to vector<6x128xf32>
    %13 = arith.addf %10, %12 : vector<6x128xf32>
    %c0_9 = arith.constant 0 : index
    %c0_10 = arith.constant 0 : index
    %c0_11 = arith.constant 0 : index
    %14 = vector.load %arg6[%c0_9, %c0_10, %c0_11] : memref<1x6x128xf32, #tpu.memory_space<vmem>>, vector<1x6x128xf32>
    %15 = vector.shape_cast %14 : vector<1x6x128xf32> to vector<6x128xf32>
    %16 = vector.shape_cast %13 : vector<6x128xf32> to vector<1x6x128xf32>
    tpu.vector_store %arg6[%c0_9, %c0_10, %c0_11], %16 {strides = array<i32>} : memref<1x6x128xf32, #tpu.memory_space<vmem>>, vector<1x6x128xf32>,
    return
  }
  func.func @transform_0(%arg0: i32, %arg1: i32) -> (i32, i32, i32) {
    %c0_i32 = arith.constant 0 : i32
    %c0_i32_0 = arith.constant 0 : i32
    return %arg0, %c0_i32, %arg1 : i32, i32, i32
  }
  func.func @transform_1(%arg0: i32, %arg1: i32) -> (i32, i32, i32) {
    %c1_i32 = arith.constant 1 : i32
    %0 = arith.addi %arg1, %c1_i32 : i32
    %c1_i32_0 = arith.constant 1 : i32
    %1 = arith.muli %0, %c1_i32_0 : i32
    %c0_i32 = arith.constant 0 : i32
    %c0_i32_1 = arith.constant 0 : i32
    return %arg0, %c0_i32, %1 : i32, i32, i32
  }
  func.func @transform_2(%arg0: i32, %arg1: i32) -> (i32, i32) {
    %c0_i32 = arith.constant 0 : i32
    %c0_i32_0 = arith.constant 0 : i32
    %c0_i32_1 = arith.constant 0 : i32
    return %c0_i32, %c0_i32_0 : i32, i32
  }
  func.func @transform_3(%arg0: i32, %arg1: i32) -> (i32, i32) {
    %c0_i32 = arith.constant 0 : i32
    %c0_i32_0 = arith.constant 0 : i32
    %c0_i32_1 = arith.constant 0 : i32
    return %c0_i32, %c0_i32_0 : i32, i32
  }
  func.func @transform_4(%arg0: i32, %arg1: i32) -> (i32, i32, i32) {
    %c0_i32 = arith.constant 0 : i32
    %c0_i32_0 = arith.constant 0 : i32
    return %arg0, %c0_i32, %arg1 : i32, i32, i32
  }
}

</mosaic_0001>

<llo_original>
// kernel: tpu_custom_call.1
$region0: #{tpu_custom_call.1}
  #allocation0 [shape = 'u32[]', space=smem, size = 0x4, offset = 0x4, fixed_abs, tag = 'smem constant byte address 0x4 - core index']
  #allocation1 [shape = 'u32[144,128]{1,0:T(1,128)}', space=vmem, size = 0x12000, scoped, tag = 'internal scratch']
  %s0 = inlined_call_operand.vmem [shape: bf16[2,4,256], index: 0, kind: input, shape index: {}]
  %s1 = inlined_call_operand.hbm [shape: bf16[2,4,256], index: 1, kind: input, shape index: {}]
  %s2 = inlined_call_operand.vmem [shape: bf16[6,12], index: 2, kind: input, shape index: {}]
  %s3 = inlined_call_operand.vmem [shape: f32[6,1], index: 3, kind: input, shape index: {}]
  %s4 = inlined_call_operand.vmem [shape: f32[2,6,128], index: 4, kind: output, shape index: {}]
  %s5 = sld [smem:[#allocation0]]
  $region53: #{tpu_custom_call.1} parent=0
    _
  %s7 = ssub.s32 1, %s5
  %s8 = scalar_select 0, %s7, %s5
  $region1: #{tpu_custom_call.1} parent=0
    #allocation2 [shape = 'u8[2048]{0}', space=vmem, size = 0x800, scoped, tag = 'input window, operand 1']
    #allocation3 [shape = 's32[2]{0}', space=sflag, size = 0x8, scoped, tag = 'scoped memory for tpu_custom_call.1']
    %9 = vsyncpa [#allocation3], 0
    %s10 = scalar_lea.sflag [#allocation3], 1
    %11 = vsyncpa %s10, 0
    loop: start=0, step=1, limit=4
    $region2: #{tpu_custom_call.1} parent=1 // loop_pre_header
      _
    $region3: #{tpu_custom_call.1} parent=1 // loop_header
      %s13 = sphi 0, %s17
      %p14 = scmp.ge.s32.totalorder %s13, 4
      %s20 = sphi 0, %s32
      %s21 = sphi 0, %s28
      %s22 = sphi 0, %s20
      %s23 = sphi 0, %s21
      %s24 = sphi 0, %s22
      %s25 = sphi 0, %s23
      %s37 = sphi 0, %s39
      %s40 = sphi 0, %s37
      %s41 = sphi 0, %s40
      %s57 = sphi 0, %s41
      %s67 = sphi 0, %s69
      %s70 = sphi 0, %s67
      %s71 = sphi 0, %s70
      %s87 = sphi 0, %s71
      %s91 = sphi 0, %s91
      %s93 = sphi 0, %s91
      %s94 = sphi 0, %s93
      %s108 = sphi 0, %s94
      %s112 = sphi 0, %s112
      %s114 = sphi 0, %s112
      %s115 = sphi 0, %s114
      %s129 = sphi 0, %s115
      %s137 = sphi 0, %s139
      %s140 = sphi 0, %s137
      %s141 = sphi 0, %s140
      %s157 = sphi 0, %s141
    $region4: #{tpu_custom_call.1} parent=1 // loop_header_branch
      %16 = sbr.rel (%p14) target = $region8
    $region5: #{tpu_custom_call.1} parent=1 // loop_body
      %s18 = ssub.s32 %s13, 1
      %s19 = ssub.s32 %s13, 2
      %s26 = sadd.s32 1, %s21
      %p27 = scmp.ge.s32.totalorder %s26, 1
      %s28 = scalar_select %p27, 0, %s26
      %s29 = sadd.s32 1, %s20
      %s30 = scalar_select %p27, %s29, %s20
      %p31 = scmp.ge.s32.totalorder %s30, 2
      %s32 = scalar_select %p31, 0, %s30
      %s33 = ssub.s32 %s20, %s32
      %s34 = ssub.s32 %s21, %s28
      %s35 = sor.u32 %s33, %s34
      %p36 = scmp.eq.s32.totalorder %s35, 0
      %s38 = sadd.s32 %s37, 1
      %s39 = scalar_select %p36, %s37, %s38
      %p42 = pneg %p36
      %p43 = scmp.eq.s32.totalorder %s13, 1
      %p44 = por %p42, %p43
      %p45 = scmp.ne.s32.totalorder %s37, %s40
      %p46 = scmp.eq.s32.totalorder %s13, 0
      %p47 = por %p45, %p46
      %p48 = scmp.ne.s32.totalorder %s37, %s40
      %p49 = scmp.eq.s32.totalorder %s18, 1
      %p50 = por %p48, %p49
      %p51 = scmp.ne.s32.totalorder %s40, %s41
      %p52 = scmp.eq.s32.totalorder %s18, 0
      %p53 = por %p51, %p52
      %p54 = scmp.ne.s32.totalorder %s40, %s41
      %p55 = scmp.eq.s32.totalorder %s19, 1
      %p56 = por %p54, %p55
      %p58 = scmp.ne.s32.totalorder %s41, %s57
      %p59 = scmp.eq.s32.totalorder %s19, 0
      %p60 = por %p58, %p59
      %s61 = sadd.s32 %s21, 1
      %s62 = sadd.s32 %s28, 1
      %s63 = ssub.s32 %s20, %s32
      %s64 = ssub.s32 %s61, %s62
      %s65 = sor.u32 %s63, %s64
      %p66 = scmp.eq.s32.totalorder %s65, 0
      %s68 = sadd.s32 %s67, 1
      %s69 = scalar_select %p66, %s67, %s68
      %p72 = pneg %p66
      %p73 = scmp.eq.s32.totalorder %s13, 1
      %p74 = por %p72, %p73
      %p75 = scmp.ne.s32.totalorder %s67, %s70
      %p76 = scmp.eq.s32.totalorder %s13, 0
      %p77 = por %p75, %p76
      %p78 = scmp.ne.s32.totalorder %s67, %s70
      %p79 = scmp.eq.s32.totalorder %s18, 1
      %p80 = por %p78, %p79
      %p81 = scmp.ne.s32.totalorder %s70, %s71
      %p82 = scmp.eq.s32.totalorder %s18, 0
      %p83 = por %p81, %p82
      %p84 = scmp.ne.s32.totalorder %s70, %s71
      %p85 = scmp.eq.s32.totalorder %s19, 1
      %p86 = por %p84, %p85
      %p88 = scmp.ne.s32.totalorder %s71, %s87
      %p89 = scmp.eq.s32.totalorder %s19, 0
      %p90 = por %p88, %p89
      %s92 = sadd.s32 %s91, 1
      %p95 = scmp.eq.s32.totalorder %s13, 1
      %p96 = scmp.ne.s32.totalorder %s91, %s93
      %p97 = scmp.eq.s32.totalorder %s13, 0
      %p98 = por %p96, %p97
      %p99 = scmp.ne.s32.totalorder %s91, %s93
      %p100 = scmp.eq.s32.totalorder %s18, 1
      %p101 = por %p99, %p100
      %p102 = scmp.ne.s32.totalorder %s93, %s94
      %p103 = scmp.eq.s32.totalorder %s18, 0
      %p104 = por %p102, %p103
      %p105 = scmp.ne.s32.totalorder %s93, %s94
      %p106 = scmp.eq.s32.totalorder %s19, 1
      %p107 = por %p105, %p106
      %p109 = scmp.ne.s32.totalorder %s94, %s108
      %p110 = scmp.eq.s32.totalorder %s19, 0
      %p111 = por %p109, %p110
      %s113 = sadd.s32 %s112, 1
      %p116 = scmp.eq.s32.totalorder %s13, 1
      %p117 = scmp.ne.s32.totalorder %s112, %s114
      %p118 = scmp.eq.s32.totalorder %s13, 0
      %p119 = por %p117, %p118
      %p120 = scmp.ne.s32.totalorder %s112, %s114
      %p121 = scmp.eq.s32.totalorder %s18, 1
      %p122 = por %p120, %p121
      %p123 = scmp.ne.s32.totalorder %s114, %s115
      %p124 = scmp.eq.s32.totalorder %s18, 0
      %p125 = por %p123, %p124
      %p126 = scmp.ne.s32.totalorder %s114, %s115
      %p127 = scmp.eq.s32.totalorder %s19, 1
      %p128 = por %p126, %p127
      %p130 = scmp.ne.s32.totalorder %s115, %s129
      %p131 = scmp.eq.s32.totalorder %s19, 0
      %p132 = por %p130, %p131
      %s133 = ssub.s32 %s20, %s32
      %s134 = ssub.s32 %s21, %s28
      %s135 = sor.u32 %s133, %s134
      %p136 = scmp.eq.s32.totalorder %s135, 0
      %s138 = sadd.s32 %s137, 1
      %s139 = scalar_select %p136, %s137, %s138
      %p142 = pneg %p136
      %p143 = scmp.eq.s32.totalorder %s13, 1
      %p144 = por %p142, %p143
      %p145 = scmp.ne.s32.totalorder %s137, %s140
      %p146 = scmp.eq.s32.totalorder %s13, 0
      %p147 = por %p145, %p146
      %p148 = scmp.ne.s32.totalorder %s137, %s140
      %p149 = scmp.eq.s32.totalorder %s18, 1
      %p150 = por %p148, %p149
      %p151 = scmp.ne.s32.totalorder %s140, %s141
      %p152 = scmp.eq.s32.totalorder %s18, 0
      %p153 = por %p151, %p152
      %p154 = scmp.ne.s32.totalorder %s140, %s141
      %p155 = scmp.eq.s32.totalorder %s19, 1
      %p156 = por %p154, %p155
      %p158 = scmp.ne.s32.totalorder %s141, %s157
      %p159 = scmp.eq.s32.totalorder %s19, 0
      %p160 = por %p158, %p159
      %p161 = scmp.le.s32.totalorder 1, %s13
      %p162 = scmp.lt.s32.totalorder %s13, 3
      %p163 = pnand %p161, %p162
      %p164 = pneg %p163
      // Predicated region
      $region9: #{tpu_custom_call.1} parent=5 // pred_check
        _
      $region10: #{tpu_custom_call.1} parent=5 // pred_check_branch
        %166 = sbr.rel (%p163) target = $region12
      $region11: #{tpu_custom_call.1} parent=5 // pred_region
        %s167 = ssub.s32 %s13, 1
        // Predicated region
        $region13: #{tpu_custom_call.1} parent=11 // pred_check
          %p168 = pneg %p104
        $region14: #{tpu_custom_call.1} parent=11 // pred_check_branch
          %170 = sbr.rel (%p168) target = $region16
        $region15: #{tpu_custom_call.1} parent=11 // pred_region
          _
        $region16: #{tpu_custom_call.1} parent=11 // pred_fallthru
          _
        // Predicated region
        $region17: #{tpu_custom_call.1} parent=11 // pred_check
          %p171 = pneg %p125
        $region18: #{tpu_custom_call.1} parent=11 // pred_check_branch
          %173 = sbr.rel (%p171) target = $region20
        $region19: #{tpu_custom_call.1} parent=11 // pred_region
          _
        $region20: #{tpu_custom_call.1} parent=11 // pred_fallthru
          _
      $region12: #{tpu_custom_call.1} parent=5 // pred_fallthru
        _
      %p174 = scmp.lt.s32.totalorder %s13, 2
      // Predicated region
      $region21: #{tpu_custom_call.1} parent=5 // pred_check
        %p175 = pneg %p174
      $region22: #{tpu_custom_call.1} parent=5 // pred_check_branch
        %177 = sbr.rel (%p175) target = $region24
      $region23: #{tpu_custom_call.1} parent=5 // pred_region
        // Predicated region
        $region25: #{tpu_custom_call.1} parent=23 // pred_check
          %p178 = pneg %p47
        $region26: #{tpu_custom_call.1} parent=23 // pred_check_branch
          %180 = sbr.rel (%p178) target = $region28
        $region27: #{tpu_custom_call.1} parent=23 // pred_region
          %p181 = scmp.lt.s32.totalorder %s20, 1
          %s182 = scalar_select %p181, %s20, 1
          %p183 = scmp.lt.s32.totalorder %s21, 1
          %s184 = scalar_select %p183, %s21, 1
          %s185 = smul.addr %s182, 2
          %s186 = sadd.s32 %s184, %s185
          %s187 = smul.addr %s186, 2
          %s188 = scalar_lea.vmem %s0, %s187
        $region28: #{tpu_custom_call.1} parent=23 // pred_fallthru
          _
        // Predicated region
        $region29: #{tpu_custom_call.1} parent=23 // pred_check
          %p189 = pneg %p77
        $region30: #{tpu_custom_call.1} parent=23 // pred_check_branch
          %191 = sbr.rel (%p189) target = $region32
        $region31: #{tpu_custom_call.1} parent=23 // pred_region
          %s192 = sand.u32 %s67, 1
          %s193 = scalar_lea.sflag [#allocation3], %s192
          %s194 = sand.u32 %s67, 1
          %s195 = smul.addr %s194, 2
          %s196 = scalar_lea.vmem [#allocation2], %s195
          %s197 = sadd.s32 %s21, 1
          %s199 = ssub.s32 32, 32
          %200 = vsyncadd %s193, %s199
          %s201 = smul.addr %s20, 2
          %s202 = sadd.s32 %s197, %s201
          %s203 = smul.addr %s202, 32
          %s204 = scalar_lea.hbm %s1, %s203
          %s206 = sshll.u32 %s196, 4
          %s207 = int_to_ptr.vmem [resolvable:$true] %s206
          %209 = dma.hbm_to_vmem [thread:$0]  %s204, 32, %s207, %s193
        $region32: #{tpu_custom_call.1} parent=23 // pred_fallthru
          _
      $region24: #{tpu_custom_call.1} parent=5 // pred_fallthru
        _
      %p210 = scmp.le.s32.totalorder 1, %s13
      %p211 = scmp.lt.s32.totalorder %s13, 3
      %p212 = pnand %p210, %p211
      %p213 = pneg %p212
      // Predicated region
      $region33: #{tpu_custom_call.1} parent=5 // pred_check
        _
      $region34: #{tpu_custom_call.1} parent=5 // pred_check_branch
        %215 = sbr.rel (%p212) target = $region36
      $region35: #{tpu_custom_call.1} parent=5 // pred_region
        %s216 = ssub.s32 %s13, 1
        %s217 = sand.u32 %s70, 1
        %s218 = scalar_lea.sflag [#allocation3], %s217
        %s219 = sand.u32 %s70, 1
        %s220 = smul.addr %s219, 2
        %s221 = scalar_lea.vmem [#allocation2], %s220
        // Predicated region
        $region37: #{tpu_custom_call.1} parent=35 // pred_check
          %p222 = pneg %p83
        $region38: #{tpu_custom_call.1} parent=35 // pred_check_branch
          %224 = sbr.rel (%p222) target = $region40
        $region39: #{tpu_custom_call.1} parent=35 // pred_region
          %225 = dma.done %s218, 32
        $region40: #{tpu_custom_call.1} parent=35 // pred_fallthru
          _
        %p226 = scmp.lt.s32.totalorder %s22, 1
        %s227 = scalar_select %p226, %s22, 1
        %p228 = scmp.lt.s32.totalorder %s23, 1
        %s229 = scalar_select %p228, %s23, 1
        %s230 = smul.addr %s227, 2
        %s231 = sadd.s32 %s229, %s230
        %s232 = smul.addr %s231, 2
        %s233 = scalar_lea.vmem %s0, %s232
        %p234 = pneg %p53
        %p235 = pneg %p50
        %s236 = sand.u32 %s70, 1
        %s237 = scalar_lea.sflag [#allocation3], %s236
        %s238 = sand.u32 %s70, 1
        %s239 = smul.addr %s238, 2
        %s240 = scalar_lea.vmem [#allocation2], %s239
        %p241 = pneg %p83
        %p242 = pneg %p80
        %p243 = pneg %p104
        %p244 = pneg %p101
        %p245 = pneg %p125
        %p246 = pneg %p122
        %p247 = pneg %p153
        %p248 = pneg %p150
        %p249 = scmp.lt.s32.totalorder %s22, 1
        %s250 = scalar_select %p249, %s22, 1
        %p251 = scmp.lt.s32.totalorder %s23, 0
        %s252 = scalar_select %p251, %s23, 0
        %s253 = sadd.s32 %s252, %s250
        %s254 = smul.addr %s253, 8
        %s255 = scalar_lea.vmem %s4, %s254
        %p256 = scmp.lt.s32.totalorder %s22, 1
        %s257 = scalar_select %p256, %s22, 1
        %p258 = scmp.lt.s32.totalorder %s23, 1
        %s259 = scalar_select %p258, %s23, 1
        %s260 = smul.addr %s257, 2
        %s261 = sadd.s32 %s259, %s260
        %s262 = smul.addr %s261, 2
        %s263 = scalar_lea.vmem %s0, %s262
        %s264 = sadd.s32 %s23, 1
        %p265 = scmp.lt.s32.totalorder %s22, 1
        %s266 = scalar_select %p265, %s22, 1
        %p267 = scmp.lt.s32.totalorder %s23, 0
        %s268 = scalar_select %p267, %s23, 0
        %s269 = sadd.s32 %s268, %s266
        %s270 = smul.addr %s269, 8
        %s271 = scalar_lea.vmem %s4, %s270
        %v273 = vld [vmem:[%s263] sm:$0x3]
        %v274 = vld [vmem:[%s221] sm:$0x3]
        %v277 = vrot.slane %v273, 6
        %v278 = vrot.slane %v274, 6
        %279 = vrot.lane.b32.xlu0 %v277, 127
        %v280 = vpop.permute.xlu0 %279
        %281 = vrot.lane.b32.xlu0 %v278, 127
        %v282 = vpop.permute.xlu0 %281
        %vm283 = vcmask 1039360
        %v284 = vsel %vm283, %v280, %v282
        %v285 = vrot.slane %v273, 4
        %v286 = vrot.slane %v274, 4
        %287 = vrot.lane.b32.xlu0 %v285, 126
        %v288 = vpop.permute.xlu0 %287
        %289 = vrot.lane.b32.xlu0 %v286, 126
        %v290 = vpop.permute.xlu0 %289
        %vm291 = vcmask 1031168
        %v292 = vsel %vm291, %v288, %v290
        %vm293 = vcmask 1041408
        %v296 = vsel %vm293, %v273, %v284
        %vm297 = vcmask 1043456
        %v299 = vsel %vm297, %v296, %v292
        %v300 = vld [vmem:[%s2] sm:$0x7]
        %v301 = vld [vmem:[%s3] sm:$0x3f]
        %303 = vset.pattern.permute.xlu0 0
        %304 = vperm.xlu0 %303, %v301
        %v305 = vpop.permute.xlu0 %304
        %vm307 = vcmask 97280
        %v309 = vsel %vm307, %v300, 0
        %vm311 = vcmask 1045504
        %v312 = vsel %vm311, %v299, 0
        %314 = vmatprep.subr.bf16.mxu0 0
        %315 = vmatpush1.bf16.msra.mxu0 %v312
        %316 = vmatprep.subr.bf16.mxu0 0
        %317 = vmatpush1.bf16.msra.mxu0 0
        %318 = vmatprep.subr.bf16.mxu0 0
        %319 = vmatpush1.bf16.msra.mxu0 0
        %320 = vmatprep.subr.bf16.mxu0 0
        %321 = vmatpush1.bf16.msra.mxu0 0
        %322 = vmatprep.subr.bf16.mxu0 0
        %323 = vmatpush1.bf16.msra.mxu0 0
        %324 = vmatprep.subr.bf16.mxu0 0
        %325 = vmatpush1.bf16.msra.mxu0 0
        %326 = vmatprep.subr.bf16.mxu0 0
        %327 = vmatpush1.bf16.msra.mxu0 0
        %328 = vmatprep.subr.bf16.mxu0 0
        %329 = vmatpush1.bf16.msra.mxu0 0
        %330 = vmatprep.subr.bf16.mxu0 0
        %331 = vmatpush1.bf16.msra.mxu0 0
        %332 = vmatprep.subr.bf16.mxu0 0
        %333 = vmatpush1.bf16.msra.mxu0 0
        %334 = vmatprep.subr.bf16.mxu0 0
        %335 = vmatpush1.bf16.msra.mxu0 0
        %336 = vmatprep.subr.bf16.mxu0 0
        %337 = vmatpush1.bf16.msra.mxu0 0
        %338 = vmatprep.subr.bf16.mxu0 0
        %339 = vmatpush1.bf16.msra.mxu0 0
        %340 = vmatprep.subr.bf16.mxu0 0
        %341 = vmatpush1.bf16.msra.mxu0 0
        %342 = vmatprep.subr.bf16.mxu0 0
        %343 = vmatpush1.bf16.msra.mxu0 0
        %344 = vmatprep.subr.bf16.mxu0 0
        %345 = vmatpush1.bf16.msra.mxu0 0
        %346 = vmatprep.mubr.bf16.mxu0 0
        %347 = vmatmul.mubr.bf16.gmra.mrb[0].mxu0 %v309
        %v348 = vpop.f32.mrb[0].mxu0
        %v349 = vadd.f32 %v305, %v348
        %v350 = vpop.f32.mrb[0].mxu0
        %v351 = vpop.f32.mrb[0].mxu0
        %v352 = vpop.f32.mrb[0].mxu0
        %353 = vdwg.mxu0
        %354 = vst [vmem:[%s271] sm:$0x3f] %v349
        %p355 = scmp.lt.s32.totalorder %s22, 1
        %s356 = scalar_select %p355, %s22, 1
        %p357 = scmp.lt.s32.totalorder %s23, 0
        %s358 = scalar_select %p357, %s23, 0
        %s359 = sadd.s32 %s358, %s356
        %s360 = smul.addr %s359, 8
        %s361 = scalar_lea.vmem %s4, %s360
        // Predicated region
        $region41: #{tpu_custom_call.1} parent=35 // pred_check
          %p362 = pneg %p150
        $region42: #{tpu_custom_call.1} parent=35 // pred_check_branch
          %364 = sbr.rel (%p362) target = $region44
        $region43: #{tpu_custom_call.1} parent=35 // pred_region
          _
        $region44: #{tpu_custom_call.1} parent=35 // pred_fallthru
          _
      $region36: #{tpu_custom_call.1} parent=5 // pred_fallthru
        _
      %p365 = scmp.le.s32.totalorder 2, %s13
      // Predicated region
      $region45: #{tpu_custom_call.1} parent=5 // pred_check
        %p366 = pneg %p365
      $region46: #{tpu_custom_call.1} parent=5 // pred_check_branch
        %368 = sbr.rel (%p366) target = $region48
      $region47: #{tpu_custom_call.1} parent=5 // pred_region
        %s369 = ssub.s32 %s13, 2
        // Predicated region
        $region49: #{tpu_custom_call.1} parent=47 // pred_check
          %p370 = pneg %p156
        $region50: #{tpu_custom_call.1} parent=47 // pred_check_branch
          %372 = sbr.rel (%p370) target = $region52
        $region51: #{tpu_custom_call.1} parent=47 // pred_region
          %p373 = scmp.lt.s32.totalorder %s24, 1
          %s374 = scalar_select %p373, %s24, 1
          %p375 = scmp.lt.s32.totalorder %s25, 0
          %s376 = scalar_select %p375, %s25, 0
          %s377 = sadd.s32 %s376, %s374
          %s378 = smul.addr %s377, 8
          %s379 = scalar_lea.vmem %s4, %s378
        $region52: #{tpu_custom_call.1} parent=47 // pred_fallthru
          _
      $region48: #{tpu_custom_call.1} parent=5 // pred_fallthru
        _
    $region6: #{tpu_custom_call.1} parent=1 // loop_footer
      %s17 = sadd.s32 1, %s13
    $region7: #{tpu_custom_call.1} parent=1 // loop_footer_branch
      %12 = sbr.rel target = $region3
    $region8: #{tpu_custom_call.1} parent=1 // loop_exit
      _
    %380 = vsyncpa [#allocation3], 1
    %s381 = scalar_lea.sflag [#allocation3], 1
    %382 = vsyncpa %s381, 1

</llo_original>
